<compile_context>
chip_gen: v5e
topology: v5e:2x2
jax: 0.10.0
libtpu: 0.0.40
codegen_flags: <defaults>
</compile_context>

<pallas_src>
import functools

import jax
import jax.numpy as jnp
from jax.experimental import pallas as pl
from jax.experimental.pallas import tpu as pltpu

EPS = 1e-5  # nn.LayerNorm default


def _round_up(x, m):
    return ((x + m - 1) // m) * m


def _patch_kernel(x_ref, w_ref, vec_ref, o_ref, *, true_dim):
    # x_ref:   (TM, Kp)  bf16 im2col patch rows (batch folded into M)
    # w_ref:   (Kp, Dp)  bf16 fused weight  (Wc_flat^T @ Wl^T), zero padded
    # vec_ref: (8,  Dp)  f32  rows: 0=fused bias, 1=gamma, 2=beta, 3=column mask
    # o_ref:   (TM, Dp)  bf16 output (padded cols beyond true_dim come out zero)
    b_fused = vec_ref[0:1, :]
    gamma = vec_ref[1:2, :]
    beta = vec_ref[2:3, :]
    mask = vec_ref[3:4, :]        # 1.0 on the true feature columns, 0.0 on padding

    # Single fused GEMM (bf16 MXU inputs, f32 accumulate). Padded columns of
    # w/b are zero, so padded columns of y are exactly zero.
    y = jnp.dot(x_ref[...], w_ref[...], preferred_element_type=jnp.float32) + b_fused

    # LayerNorm over the TRUE feature dim (two-pass, masked -> no cancellation).
    inv_d = jnp.float32(1.0 / true_dim)
    mu = jnp.sum(y, axis=-1, keepdims=True) * inv_d
    d = (y - mu) * mask                    # mask kills (-mu) in padded columns
    var = jnp.sum(d * d, axis=-1, keepdims=True) * inv_d
    y_hat = d * jax.lax.rsqrt(var + EPS)
    # NOTE: rows beyond the true M (zero-padded patch rows) produce finite
    # constant-ish output that is sliced off in the wrapper -- harmless.

    # gamma/beta are zero on padded columns -> padded output columns are 0.
    o_ref[...] = (y_hat * gamma + beta).astype(o_ref.dtype)


def _im2col_nchw(imgs, patch, stride, dtype=None):
    """(B, C, H, W) -> (B, L, C*patch*patch); L row-major over (Ho, Wo).

    Feature order is channel-major then (kh, kw), matching
    Conv2d.weight.reshape(dim, C*kh*kw).
    """
    B, C, H, W = imgs.shape
    Ho = (H - patch) // stride + 1
    Wo = (W - patch) // stride + 1
    if dtype is not None:
        imgs = imgs.astype(dtype)  # cast BEFORE the layout ops (halves traffic)
    if stride == patch and H == Ho * patch and W == Wo * patch:
        # Pure reshape/transpose (non-overlapping patch-embed case).
        x = imgs.reshape(B, C, Ho, patch, Wo, patch)
        x = x.transpose(0, 2, 4, 1, 3, 5).reshape(B, Ho * Wo, C * patch * patch)
        return x, Ho, Wo
    # General (overlapping) stride: one conv-patches op; output feature order is
    # channel-major then filter (h, w) -> matches the conv weight layout.
    p = jax.lax.conv_general_dilated_patches(
        imgs, filter_shape=(patch, patch), window_strides=(stride, stride),
        padding="VALID")                                   # (B, C*p*p, Ho, Wo)
    x = p.reshape(B, C * patch * patch, Ho * Wo).transpose(0, 2, 1)
    return x, Ho, Wo


def _vmem_budget_bytes():
    """Usable scoped-VMEM budget: ~80% of physical (51 MiB v7x, 102 MiB v5e/v6e)."""
    try:
        phys = int(pltpu.get_tpu_info().vmem_capacity_bytes)
    except Exception:
        phys = 64 * 1024 * 1024        # conservative fallback (v7x per-TensorCore)
    return int(phys * 0.8)


def _choose_tiles(M, Kp, Dp, usable_vmem):
    """Row tile TM (multiple of 16) and padded M, sized to the VMEM budget."""

    def need(tm):
        act = 2 * tm * Kp * 2                        # bf16 x tile, double-buffered
        outb = 2 * tm * Dp * 2                       # bf16 out tile, double-buffered
        resident = 2 * (Kp * Dp * 2 + 8 * Dp * 4)    # fused weight + packed vec
        interm = 3 * tm * Dp * 4                     # f32 LN temporaries (y, d, d*d)
        return act + outb + resident + interm

    tm = min(512, _round_up(M, 16))
    while tm > 16 and need(tm) > usable_vmem:
        tm = max(16, tm // 2)
    # Keep >= 2 grid steps when M allows so both v7x TensorCores get work
    # (grid axis is marked "parallel"); v5e/v6e single-TC are unaffected.
    if _round_up(M, tm) // tm < 2 and M > 16:
        tm = max(16, _round_up((M + 1) // 2, 16))
    mp = _round_up(M, tm)
    return tm, mp


def patch_forward(imgs, params, patch, stride, out_dtype=jnp.bfloat16):
    """Pallas implementation of Patch_.forward. imgs: (B, 3, H, W)."""
    wc, bc, wl, bl, gamma, beta = (
        params["conv_w"], params["conv_b"], params["lin_w"], params["lin_b"],
        params["ln_g"], params["ln_b"],
    )
    dim = wc.shape[0]

    # im2col in bf16 (cast happens before the transpose/pad layout ops).
    x, Ho, Wo = _im2col_nchw(imgs, patch, stride, dtype=jnp.bfloat16)  # (B, L, K)
    B, L, K = x.shape
    M = B * L

    # Lane-dense padding: K, dim -> multiples of 128.
    Kp = _round_up(K, 128)
    Dp = _round_up(dim, 128)

    usable_vmem = _vmem_budget_bytes()
    TM, Mp = _choose_tiles(M, Kp, Dp, usable_vmem)

    # Batch folded into M; bf16 activations for the matmul input.
    x2 = jnp.pad(x.reshape(M, K), ((0, Mp - M), (0, Kp - K)))

    # Fused weight/bias (computed once, in f32, then cast to bf16):
    #   W_fused = Wc_flat^T @ Wl^T   (K, dim)
    #   b_fused = bc @ Wl^T + bl     (dim,)
    wc_flat = wc.reshape(dim, K).astype(jnp.float32)
    wl_t = wl.T.astype(jnp.float32)
    w_fused = jnp.pad(wc_flat.T @ wl_t,
                      ((0, Kp - K), (0, Dp - dim))).astype(jnp.bfloat16)
    b_fused = bc.astype(jnp.float32) @ wl_t + bl.astype(jnp.float32)

    # Pack bias/gamma/beta/column-mask into one resident (8, Dp) f32 tile.
    vec = jnp.stack(
        [b_fused, gamma.astype(jnp.float32), beta.astype(jnp.float32),
         jnp.ones((dim,), jnp.float32)], axis=0)                    # (4, dim)
    vec = jnp.pad(vec, ((0, 8 - 4), (0, Dp - dim)))                 # (8, Dp)

    grid = (Mp // TM,)

    cost = pl.CostEstimate(
        flops=2 * M * K * dim,
        transcendentals=M,
        bytes_accessed=Mp * Kp * 2 + Kp * Dp * 2 + 8 * Dp * 4 + Mp * Dp * 2,
    )

    out = pl.pallas_call(
        functools.partial(_patch_kernel, true_dim=dim),
        out_shape=jax.ShapeDtypeStruct((Mp, Dp), out_dtype),
        grid_spec=pltpu.PrefetchScalarGridSpec(
            num_scalar_prefetch=0,
            grid=grid,
            in_specs=[
                pl.BlockSpec((TM, Kp), lambda i: (i, 0)),   # folded patch rows
                # Constant-index (resident) blocks below: Mosaic keeps them in
                # VMEM across grid steps; pipeline_mode=pl.Buffered(1) could
                # shave their second buffer if VMEM ever becomes tight.
                pl.BlockSpec((Kp, Dp), lambda i: (0, 0)),   # fused weight (resident)
                pl.BlockSpec((8, Dp), lambda i: (0, 0)),    # packed bias/gamma/beta/mask
            ],
            out_specs=pl.BlockSpec((TM, Dp), lambda i: (i, 0)),
        ),
        compiler_params=pltpu.CompilerParams(
            dimension_semantics=("parallel",),
            vmem_limit_bytes=int(usable_vmem),
        ),
        cost_estimate=cost,
    )(x2, w_fused, vec)

    # Strip padding and restore (B, L, dim).
    return out[:M, :dim].reshape(B, L, dim)


def init_params(key, dim, patch):
    """Deterministic synthetic parameters matching Patch_.__init__ shapes."""
    k0, k1, k2, k3 = jax.random.split(key, 4)
    params = {
        "conv_w": jax.random.normal(k0, (dim, 3, patch, patch), jnp.float32) * 0.05,
        "conv_b": jax.random.normal(k1, (dim,), jnp.float32) * 0.05,
        "lin_w":  jax.random.normal(k2, (dim, dim), jnp.float32) * (1.0 / jnp.sqrt(dim)),
        "lin_b":  jax.random.normal(k3, (dim,), jnp.float32) * 0.05,
        "ln_g":   jnp.ones((dim,), jnp.float32),
        "ln_b":   jnp.zeros((dim,), jnp.float32),
    }
    return params


if __name__ == "__main__":
    dim, patch, stride = 32, 4, 4
    B, H, W = 2, 16, 16

    key = jax.random.PRNGKey(0)
    kx, kp = jax.random.split(key)
    imgs = jax.random.normal(kx, (B, 3, H, W), jnp.float32)
    params = init_params(kp, dim, patch)

    out = patch_forward(imgs, params, patch, stride)
    out = jax.block_until_ready(out)

    # Pure-JAX f32 reference (same math as the PyTorch module, no Pallas).
    x_ref, Ho, Wo = _im2col_nchw(imgs, patch, stride)          # f32 patches
    L = Ho * Wo
    h_ref = x_ref @ params["conv_w"].reshape(dim, -1).T + params["conv_b"]
    y_ref = h_ref @ params["lin_w"].T + params["lin_b"]
    mu = y_ref.mean(-1, keepdims=True)
    var = ((y_ref - mu) ** 2).mean(-1, keepdims=True)
    ref = (y_ref - mu) / jnp.sqrt(var + EPS) * params["ln_g"] + params["ln_b"]

    assert out.shape == (B, L, dim), f"bad shape {out.shape} vs {(B, L, dim)}"
    # bf16 matmul inputs + bf16 output (f32 accumulate + f32 LayerNorm).
    assert jnp.allclose(out.astype(jnp.float32), ref, atol=3e-2, rtol=3e-2), (
        f"mismatch vs reference: max abs diff "
        f"{jnp.max(jnp.abs(out.astype(jnp.float32) - ref))}"
    )

    print("KERNEL_OK")
</pallas_src>

<mosaic_0001>
module attributes {stable_mosaic.version = 11 : i64} {
  func.func @_patch_kernel(%arg0: i32, %arg1: memref<16x128xbf16, #tpu.memory_space<vmem>>, %arg2: memref<128x128xbf16, #tpu.memory_space<vmem>>, %arg3: memref<8x128xf32, #tpu.memory_space<vmem>>, %arg4: memref<16x128xbf16, #tpu.memory_space<vmem>>) attributes {dimension_semantics = [#tpu.dimension_semantics<parallel>], iteration_bounds = array<i64: 2>, scalar_prefetch = 0 : i64, scratch_operands = 0 : i64, tpu.core_type = #tpu.core_type<tc>, window_params = [{transform_indices = @transform_0, window_bounds = array<i64: 16, 128>}, {pipeline_mode = #tpu.pipeline_mode<synchronous>, transform_indices = @transform_1, window_bounds = array<i64: 128, 128>}, {pipeline_mode = #tpu.pipeline_mode<synchronous>, transform_indices = @transform_2, window_bounds = array<i64: 8, 128>}, {transform_indices = @transform_3, window_bounds = array<i64: 16, 128>}]} {
    %c0 = arith.constant 0 : index
    %c0_0 = arith.constant 0 : index
    %0 = vector.load %arg3[%c0, %c0_0] : memref<8x128xf32, #tpu.memory_space<vmem>>, vector<1x128xf32>
    %c1 = arith.constant 1 : index
    %c0_1 = arith.constant 0 : index
    %1 = vector.load %arg3[%c1, %c0_1] : memref<8x128xf32, #tpu.memory_space<vmem>>, vector<1x128xf32>
    %c2 = arith.constant 2 : index
    %c0_2 = arith.constant 0 : index
    %2 = vector.load %arg3[%c2, %c0_2] : memref<8x128xf32, #tpu.memory_space<vmem>>, vector<1x128xf32>
    %c3 = arith.constant 3 : index
    %c0_3 = arith.constant 0 : index
    %3 = vector.load %arg3[%c3, %c0_3] : memref<8x128xf32, #tpu.memory_space<vmem>>, vector<1x128xf32>
    %c0_4 = arith.constant 0 : index
    %c0_5 = arith.constant 0 : index
    %4 = vector.load %arg1[%c0_4, %c0_5] : memref<16x128xbf16, #tpu.memory_space<vmem>>, vector<16x128xbf16>
    %c0_6 = arith.constant 0 : index
    %c0_7 = arith.constant 0 : index
    %5 = vector.load %arg2[%c0_6, %c0_7] : memref<128x128xbf16, #tpu.memory_space<vmem>>, vector<128x128xbf16>
    %cst = arith.constant dense<0.000000e+00> : vector<16x128xf32>
    %6 = tpu.matmul %4, %5, %cst {dimension_numbers = #tpu.dot_dimension_numbers<[1], [0], [0], [1], [0, 0, 1, 1], [], []>} : vector<16x128xbf16>, vector<128x128xbf16>, vector<16x128xf32> -> vector<16x128xf32>
    %7 = vector.broadcast %0 : vector<1x128xf32> to vector<16x128xf32>
    %8 = arith.addf %6, %7 : vector<16x128xf32>
    %cst_8 = arith.constant dense<0.000000e+00> : vector<16xf32>
    %9 = vector.multi_reduction <add>, %8, %cst_8 [1] : vector<16x128xf32> to vector<16xf32>
    %10 = vector.shape_cast %9 : vector<16xf32> to vector<16x1xf32>
    %cst_9 = arith.constant 3.125000e-02 : f32
    %11 = vector.broadcast %cst_9 : f32 to vector<16x1xf32>
    %12 = arith.mulf %10, %11 : vector<16x1xf32>
    %13 = vector.broadcast %12 : vector<16x1xf32> to vector<16x128xf32>
    %14 = arith.subf %8, %13 : vector<16x128xf32>
    %15 = vector.broadcast %3 : vector<1x128xf32> to vector<16x128xf32>
    %16 = arith.mulf %14, %15 : vector<16x128xf32>
    %17 = arith.mulf %16, %16 : vector<16x128xf32>
    %cst_10 = arith.constant dense<0.000000e+00> : vector<16xf32>
    %18 = vector.multi_reduction <add>, %17, %cst_10 [1] : vector<16x128xf32> to vector<16xf32>
    %19 = vector.shape_cast %18 : vector<16xf32> to vector<16x1xf32>
    %cst_11 = arith.constant 3.125000e-02 : f32
    %20 = vector.broadcast %cst_11 : f32 to vector<16x1xf32>
    %21 = arith.mulf %19, %20 : vector<16x1xf32>
    %cst_12 = arith.constant 9.99999974E-6 : f32
    %22 = vector.broadcast %cst_12 : f32 to vector<16x1xf32>
    %23 = arith.addf %21, %22 : vector<16x1xf32>
    %24 = math.rsqrt %23 : vector<16x1xf32>
    %25 = vector.broadcast %24 : vector<16x1xf32> to vector<16x128xf32>
    %26 = arith.mulf %16, %25 : vector<16x128xf32>
    %27 = vector.broadcast %1 : vector<1x128xf32> to vector<16x128xf32>
    %28 = arith.mulf %26, %27 : vector<16x128xf32>
    %29 = vector.broadcast %2 : vector<1x128xf32> to vector<16x128xf32>
    %30 = arith.addf %28, %29 : vector<16x128xf32>
    %31 = arith.truncf %30 : vector<16x128xf32> to vector<16x128xbf16>
    %c0_13 = arith.constant 0 : index
    %c0_14 = arith.constant 0 : index
    %32 = vector.load %arg4[%c0_13, %c0_14] : memref<16x128xbf16, #tpu.memory_space<vmem>>, vector<16x128xbf16>
    tpu.vector_store %arg4[%c0_13, %c0_14], %31 {strides = array<i32>} : memref<16x128xbf16, #tpu.memory_space<vmem>>, vector<16x128xbf16>,
    return
  }
  func.func @transform_0(%arg0: i32) -> (i32, i32) {
    %c0_i32 = arith.constant 0 : i32
    %c0_i32_0 = arith.constant 0 : i32
    return %arg0, %c0_i32 : i32, i32
  }
  func.func @transform_1(%arg0: i32) -> (i32, i32) {
    %c0_i32 = arith.constant 0 : i32
    %c0_i32_0 = arith.constant 0 : i32
    %c0_i32_1 = arith.constant 0 : i32
    return %c0_i32, %c0_i32_0 : i32, i32
  }
  func.func @transform_2(%arg0: i32) -> (i32, i32) {
    %c0_i32 = arith.constant 0 : i32
    %c0_i32_0 = arith.constant 0 : i32
    %c0_i32_1 = arith.constant 0 : i32
    return %c0_i32, %c0_i32_0 : i32, i32
  }
  func.func @transform_3(%arg0: i32) -> (i32, i32) {
    %c0_i32 = arith.constant 0 : i32
    %c0_i32_0 = arith.constant 0 : i32
    return %arg0, %c0_i32 : i32, i32
  }
}

</mosaic_0001>

<llo_original>
// kernel: tpu_custom_call.1
$region0: #{tpu_custom_call.1}
  #allocation0 [shape = 'u32[]', space=smem, size = 0x4, offset = 0x4, fixed_abs, tag = 'smem constant byte address 0x4 - core index']
  #allocation1 [shape = 'u32[72,128]{1,0:T(1,128)}', space=vmem, size = 0x9000, scoped, tag = 'internal scratch']
  %s0 = inlined_call_operand.hbm [shape: bf16[32,128], index: 0, kind: input, shape index: {}]
  %s1 = inlined_call_operand.hbm [shape: bf16[128,128], index: 1, kind: input, shape index: {}]
  %s2 = inlined_call_operand.hbm [shape: f32[8,128], index: 2, kind: input, shape index: {}]
  %s3 = inlined_call_operand.hbm [shape: bf16[32,128], index: 3, kind: output, shape index: {}]
  %s4 = sld [smem:[#allocation0]]
  $region57: #{tpu_custom_call.1} parent=0
    _
  %s6 = ssub.s32 1, %s4
  %s7 = scalar_select 0, %s6, %s4
  $region1: #{tpu_custom_call.1} parent=0
    #allocation2 [shape = 'u8[8192]{0}', space=vmem, size = 0x2000, scoped, tag = 'input window, operand 0']
    #allocation3 [shape = 's32[2]{0}', space=sflag, size = 0x8, scoped, tag = 'scoped memory for tpu_custom_call.1']
    #allocation4 [shape = 's32[2]{0}', space=sflag, size = 0x8, scoped, tag = 'scoped memory for tpu_custom_call.1']
    #allocation5 [shape = 'u8[32768]{0}', space=vmem, size = 0x8000, scoped, tag = 'input window, operand 1, single buffered']
    #allocation6 [shape = 's32[1]{0}', space=sflag, size = 0x4, scoped, tag = 'scoped memory for tpu_custom_call.1']
    #allocation7 [shape = 'u8[4096]{0}', space=vmem, size = 0x1000, scoped, tag = 'input window, operand 2, single buffered']
    #allocation8 [shape = 'u8[8192]{0}', space=vmem, size = 0x2000, scoped, tag = 'output window, operand 0']
    %8 = vsyncpa [#allocation3], 0
    %s9 = scalar_lea.sflag [#allocation3], 1
    %10 = vsyncpa %s9, 0
    %11 = vsyncpa [#allocation6], 0
    %12 = vsyncpa [#allocation4], 0
    %s13 = scalar_lea.sflag [#allocation4], 1
    %14 = vsyncpa %s13, 0
    loop: start=0, step=1, limit=4
    $region2: #{tpu_custom_call.1} parent=1 // loop_pre_header
      _
    $region3: #{tpu_custom_call.1} parent=1 // loop_header
      %s16 = sphi 0, %s20
      %p17 = scmp.ge.s32.totalorder %s16, 4
      %s26 = sphi 0, %s28
      %s29 = sphi 0, %s26
      %s30 = sphi 0, %s29
      %s46 = sphi 0, %s30
      %s50 = sphi 0, %s50
      %s52 = sphi 0, %s50
      %s53 = sphi 0, %s52
      %s67 = sphi 0, %s53
      %s71 = sphi 0, %s71
      %s73 = sphi 0, %s71
      %s74 = sphi 0, %s73
      %s88 = sphi 0, %s74
      %s94 = sphi 0, %s96
      %s97 = sphi 0, %s94
      %s98 = sphi 0, %s97
      %s114 = sphi 0, %s98
    $region4: #{tpu_custom_call.1} parent=1 // loop_header_branch
      %19 = sbr.rel (%p17) target = $region8
    $region5: #{tpu_custom_call.1} parent=1 // loop_body
      %s21 = ssub.s32 %s16, 1
      %s22 = ssub.s32 %s16, 2
      %s23 = sadd.s32 %s16, 1
      %s24 = ssub.s32 %s16, %s23
      %p25 = scmp.eq.s32.totalorder %s24, 0
      %s27 = sadd.s32 %s26, 1
      %s28 = scalar_select %p25, %s26, %s27
      %p31 = pneg %p25
      %p32 = scmp.eq.s32.totalorder %s16, 1
      %p33 = por %p31, %p32
      %p34 = scmp.ne.s32.totalorder %s26, %s29
      %p35 = scmp.eq.s32.totalorder %s16, 0
      %p36 = por %p34, %p35
      %p37 = scmp.ne.s32.totalorder %s26, %s29
      %p38 = scmp.eq.s32.totalorder %s21, 1
      %p39 = por %p37, %p38
      %p40 = scmp.ne.s32.totalorder %s29, %s30
      %p41 = scmp.eq.s32.totalorder %s21, 0
      %p42 = por %p40, %p41
      %p43 = scmp.ne.s32.totalorder %s29, %s30
      %p44 = scmp.eq.s32.totalorder %s22, 1
      %p45 = por %p43, %p44
      %p47 = scmp.ne.s32.totalorder %s30, %s46
      %p48 = scmp.eq.s32.totalorder %s22, 0
      %p49 = por %p47, %p48
      %s51 = sadd.s32 %s50, 1
      %p54 = scmp.eq.s32.totalorder %s16, 1
      %p55 = scmp.ne.s32.totalorder %s50, %s52
      %p56 = scmp.eq.s32.totalorder %s16, 0
      %p57 = por %p55, %p56
      %p58 = scmp.ne.s32.totalorder %s50, %s52
      %p59 = scmp.eq.s32.totalorder %s21, 1
      %p60 = por %p58, %p59
      %p61 = scmp.ne.s32.totalorder %s52, %s53
      %p62 = scmp.eq.s32.totalorder %s21, 0
      %p63 = por %p61, %p62
      %p64 = scmp.ne.s32.totalorder %s52, %s53
      %p65 = scmp.eq.s32.totalorder %s22, 1
      %p66 = por %p64, %p65
      %p68 = scmp.ne.s32.totalorder %s53, %s67
      %p69 = scmp.eq.s32.totalorder %s22, 0
      %p70 = por %p68, %p69
      %s72 = sadd.s32 %s71, 1
      %p75 = scmp.eq.s32.totalorder %s16, 1
      %p76 = scmp.ne.s32.totalorder %s71, %s73
      %p77 = scmp.eq.s32.totalorder %s16, 0
      %p78 = por %p76, %p77
      %p79 = scmp.ne.s32.totalorder %s71, %s73
      %p80 = scmp.eq.s32.totalorder %s21, 1
      %p81 = por %p79, %p80
      %p82 = scmp.ne.s32.totalorder %s73, %s74
      %p83 = scmp.eq.s32.totalorder %s21, 0
      %p84 = por %p82, %p83
      %p85 = scmp.ne.s32.totalorder %s73, %s74
      %p86 = scmp.eq.s32.totalorder %s22, 1
      %p87 = por %p85, %p86
      %p89 = scmp.ne.s32.totalorder %s74, %s88
      %p90 = scmp.eq.s32.totalorder %s22, 0
      %p91 = por %p89, %p90
      %s92 = ssub.s32 %s16, %s23
      %p93 = scmp.eq.s32.totalorder %s92, 0
      %s95 = sadd.s32 %s94, 1
      %s96 = scalar_select %p93, %s94, %s95
      %p99 = pneg %p93
      %p100 = scmp.eq.s32.totalorder %s16, 1
      %p101 = por %p99, %p100
      %p102 = scmp.ne.s32.totalorder %s94, %s97
      %p103 = scmp.eq.s32.totalorder %s16, 0
      %p104 = por %p102, %p103
      %p105 = scmp.ne.s32.totalorder %s94, %s97
      %p106 = scmp.eq.s32.totalorder %s21, 1
      %p107 = por %p105, %p106
      %p108 = scmp.ne.s32.totalorder %s97, %s98
      %p109 = scmp.eq.s32.totalorder %s21, 0
      %p110 = por %p108, %p109
      %p111 = scmp.ne.s32.totalorder %s97, %s98
      %p112 = scmp.eq.s32.totalorder %s22, 1
      %p113 = por %p111, %p112
      %p115 = scmp.ne.s32.totalorder %s98, %s114
      %p116 = scmp.eq.s32.totalorder %s22, 0
      %p117 = por %p115, %p116
      %p118 = scmp.le.s32.totalorder 1, %s16
      %p119 = scmp.lt.s32.totalorder %s16, 3
      %p120 = pnand %p118, %p119
      %p121 = pneg %p120
      // Predicated region
      $region9: #{tpu_custom_call.1} parent=5 // pred_check
        _
      $region10: #{tpu_custom_call.1} parent=5 // pred_check_branch
        %123 = sbr.rel (%p120) target = $region12
      $region11: #{tpu_custom_call.1} parent=5 // pred_region
        %s124 = ssub.s32 %s16, 1
        // Predicated region
        $region13: #{tpu_custom_call.1} parent=11 // pred_check
          %p125 = pneg %p63
        $region14: #{tpu_custom_call.1} parent=11 // pred_check_branch
          %127 = sbr.rel (%p125) target = $region16
        $region15: #{tpu_custom_call.1} parent=11 // pred_region
          %129 = vsyncadd [#allocation6], 0
          %s130 = sshll.u32 %s1, 4
          %s131 = int_to_ptr.hbm [resolvable:$true] %s130
          %s132 = sshll.u32 [#allocation5], 4
          %s133 = int_to_ptr.vmem [resolvable:$true] %s132
          %138 = dma.hbm_to_vmem [thread:$0]  %s131, 1024, %s133, [#allocation6], 64, 64, 4
        $region16: #{tpu_custom_call.1} parent=11 // pred_fallthru
          _
        // Predicated region
        $region17: #{tpu_custom_call.1} parent=11 // pred_check
          %p139 = pneg %p84
        $region18: #{tpu_custom_call.1} parent=11 // pred_check_branch
          %141 = sbr.rel (%p139) target = $region20
        $region19: #{tpu_custom_call.1} parent=11 // pred_region
          %143 = vsyncadd [#allocation6], 0
          %s145 = sshll.u32 %s2, 4
          %s146 = int_to_ptr.hbm [resolvable:$true] %s145
          %s147 = sshll.u32 [#allocation7], 4
          %s148 = int_to_ptr.vmem [resolvable:$true] %s147
          %150 = dma.hbm_to_vmem [thread:$0]  %s146, 128, %s148, [#allocation6]
        $region20: #{tpu_custom_call.1} parent=11 // pred_fallthru
          _
      $region12: #{tpu_custom_call.1} parent=5 // pred_fallthru
        _
      %p151 = scmp.lt.s32.totalorder %s16, 2
      // Predicated region
      $region21: #{tpu_custom_call.1} parent=5 // pred_check
        %p152 = pneg %p151
      $region22: #{tpu_custom_call.1} parent=5 // pred_check_branch
        %154 = sbr.rel (%p152) target = $region24
      $region23: #{tpu_custom_call.1} parent=5 // pred_region
        // Predicated region
        $region25: #{tpu_custom_call.1} parent=23 // pred_check
          %p155 = pneg %p36
        $region26: #{tpu_custom_call.1} parent=23 // pred_check_branch
          %157 = sbr.rel (%p155) target = $region28
        $region27: #{tpu_custom_call.1} parent=23 // pred_region
          %s158 = sand.u32 %s26, 1
          %s159 = scalar_lea.sflag [#allocation3], %s158
          %s160 = sand.u32 %s26, 1
          %s161 = smul.addr %s160, 8
          %s162 = scalar_lea.vmem [#allocation2], %s161
          %s163 = smul.u32 2, %s16
          %165 = vsyncadd %s159, 0
          %s166 = smul.addr %s163, 4
          %s167 = scalar_lea.hbm %s0, %s166
          %s168 = sshll.u32 %s167, 4
          %s169 = int_to_ptr.hbm [resolvable:$true] %s168
          %s170 = sshll.u32 %s162, 4
          %s171 = int_to_ptr.vmem [resolvable:$true] %s170
          %176 = dma.hbm_to_vmem [thread:$0]  %s169, 128, %s171, %s159, 64, 64, 4
        $region28: #{tpu_custom_call.1} parent=23 // pred_fallthru
          _
      $region24: #{tpu_custom_call.1} parent=5 // pred_fallthru
        _
      %p177 = scmp.le.s32.totalorder 1, %s16
      %p178 = scmp.lt.s32.totalorder %s16, 3
      %p179 = pnand %p177, %p178
      %p180 = pneg %p179
      // Predicated region
      $region29: #{tpu_custom_call.1} parent=5 // pred_check
        _
      $region30: #{tpu_custom_call.1} parent=5 // pred_check_branch
        %182 = sbr.rel (%p179) target = $region32
      $region31: #{tpu_custom_call.1} parent=5 // pred_region
        %s183 = ssub.s32 %s16, 1
        %s184 = sand.u32 %s29, 1
        %s185 = scalar_lea.sflag [#allocation3], %s184
        %s186 = sand.u32 %s29, 1
        %s187 = smul.addr %s186, 8
        %s188 = scalar_lea.vmem [#allocation2], %s187
        // Predicated region
        $region33: #{tpu_custom_call.1} parent=31 // pred_check
          %p189 = pneg %p42
        $region34: #{tpu_custom_call.1} parent=31 // pred_check_branch
          %191 = sbr.rel (%p189) target = $region36
        $region35: #{tpu_custom_call.1} parent=31 // pred_region
          %193 = dma.done %s185, 128
        $region36: #{tpu_custom_call.1} parent=31 // pred_fallthru
          _
        // Predicated region
        $region37: #{tpu_custom_call.1} parent=31 // pred_check
          %p194 = pneg %p63
        $region38: #{tpu_custom_call.1} parent=31 // pred_check_branch
          %196 = sbr.rel (%p194) target = $region40
        $region39: #{tpu_custom_call.1} parent=31 // pred_region
          %198 = dma.done [#allocation6], 1024
        $region40: #{tpu_custom_call.1} parent=31 // pred_fallthru
          _
        // Predicated region
        $region41: #{tpu_custom_call.1} parent=31 // pred_check
          %p199 = pneg %p84
        $region42: #{tpu_custom_call.1} parent=31 // pred_check_branch
          %201 = sbr.rel (%p199) target = $region44
        $region43: #{tpu_custom_call.1} parent=31 // pred_region
          %203 = dma.done [#allocation6], 128
        $region44: #{tpu_custom_call.1} parent=31 // pred_fallthru
          _
        %s204 = sand.u32 %s29, 1
        %s205 = scalar_lea.sflag [#allocation3], %s204
        %s206 = sand.u32 %s29, 1
        %s207 = smul.addr %s206, 8
        %s208 = scalar_lea.vmem [#allocation2], %s207
        %p209 = pneg %p42
        %p210 = pneg %p39
        %p211 = pneg %p63
        %p212 = pneg %p60
        %p213 = pneg %p84
        %p214 = pneg %p81
        %p215 = pneg %p110
        %p216 = pneg %p107
        %s217 = sand.u32 %s97, 1
        %s218 = scalar_lea.sflag [#allocation4], %s217
        %s219 = sand.u32 %s97, 1
        %s220 = smul.addr %s219, 8
        %s221 = scalar_lea.vmem [#allocation8], %s220
        %s222 = smul.u32 2, %s21
        %s223 = smul.u32 2, %s21
        %v224 = vld [vmem:[#allocation7] sm:$0x1]
        %v225 = vld [vmem:[#allocation7 + $0x1] sm:$0x1]
        %v226 = vld [vmem:[#allocation7 + $0x2] sm:$0x1]
        %v227 = vld [vmem:[#allocation7 + $0x3] sm:$0x1]
        %v228 = vld [vmem:[%s188] sm:$0xf]
        %v229 = vld [vmem:[%s188 + $0x4] sm:$0xf]
        %v230 = vld [vmem:[#allocation5] sm:$0xf]
        %v231 = vld [vmem:[#allocation5 + $0x4] sm:$0xf]
        %v232 = vld [vmem:[#allocation5 + $0x8] sm:$0xf]
        %v233 = vld [vmem:[#allocation5 + $0xc] sm:$0xf]
        %v234 = vld [vmem:[#allocation5 + $0x10] sm:$0xf]
        %v235 = vld [vmem:[#allocation5 + $0x14] sm:$0xf]
        %v236 = vld [vmem:[#allocation5 + $0x18] sm:$0xf]
        %v237 = vld [vmem:[#allocation5 + $0x1c] sm:$0xf]
        %v238 = vld [vmem:[#allocation5 + $0x20] sm:$0xf]
        %v239 = vld [vmem:[#allocation5 + $0x24] sm:$0xf]
        %v240 = vld [vmem:[#allocation5 + $0x28] sm:$0xf]
        %v241 = vld [vmem:[#allocation5 + $0x2c] sm:$0xf]
        %v242 = vld [vmem:[#allocation5 + $0x30] sm:$0xf]
        %v243 = vld [vmem:[#allocation5 + $0x34] sm:$0xf]
        %v244 = vld [vmem:[#allocation5 + $0x38] sm:$0xf]
        %v245 = vld [vmem:[#allocation5 + $0x3c] sm:$0xf]
        %v246 = vperm.slane %v224, 0
        %v249 = vunpack.c.l.b16 %v228
        %v250 = vunpack.c.l.b16 %v229
        %v251 = vpack.c.b16 %v250, %v249
        %v269 = vunpack.c.l.b16 %v230
        %v270 = vunpack.c.l.b16 %v231
        %v271 = vunpack.c.l.b16 %v232
        %v272 = vunpack.c.l.b16 %v233
        %v273 = vunpack.c.l.b16 %v234
        %v274 = vunpack.c.l.b16 %v235
        %v275 = vunpack.c.l.b16 %v236
        %v276 = vunpack.c.l.b16 %v237
        %v277 = vunpack.c.l.b16 %v238
        %v278 = vunpack.c.l.b16 %v239
        %v279 = vunpack.c.l.b16 %v240
        %v280 = vunpack.c.l.b16 %v241
        %v281 = vunpack.c.l.b16 %v242
        %v282 = vunpack.c.l.b16 %v243
        %v283 = vunpack.c.l.b16 %v244
        %v284 = vunpack.c.l.b16 %v245
        %v285 = vpack.c.b16 %v270, %v269
        %v286 = vpack.c.b16 %v272, %v271
        %v287 = vpack.c.b16 %v274, %v273
        %v288 = vpack.c.b16 %v276, %v275
        %v289 = vpack.c.b16 %v278, %v277
        %v290 = vpack.c.b16 %v280, %v279
        %v291 = vpack.c.b16 %v282, %v281
        %v292 = vpack.c.b16 %v284, %v283
        %301 = vmatpush.bf16.msra.mxu0 %v292
        %302 = vmatpush.bf16.msra.mxu0 %v291
        %303 = vmatpush.bf16.msra.mxu0 %v290
        %304 = vmatpush.bf16.msra.mxu0 %v289
        %305 = vmatpush.bf16.msra.mxu0 %v288
        %306 = vmatpush.bf16.msra.mxu0 %v287
        %307 = vmatpush.bf16.msra.mxu0 %v286
        %308 = vmatpush.bf16.msra.mxu0 %v285
        %309 = vmatmul.bf16.gmra.mxu0 %v251
        %v310 = vpop.f32.mrf.mxu0
        %v311 = vadd.f32 %v246, %v310
        %v312 = vpop.f32.mrf.mxu0
        %v313 = vadd.f32 %v246, %v312
        %314 = vdwg.mxu0
        %315 = vadd.xlane.f32.xlu0 %v311
        %v316 = vpop.xlane.xlu0 %315
        %317 = vadd.xlane.f32.xlu0 %v313
        %v318 = vpop.xlane.xlu0 %317
        %v319 = vmul.f32 %v316, 0.03125
        %v320 = vmul.f32 %v318, 0.03125
        %v321 = vsub.f32 %v311, %v319
        %v322 = vsub.f32 %v313, %v320
        %v323 = vperm.slane %v227, 0
        %v324 = vmul.f32 %v321, %v323
        %v325 = vmul.f32 %v322, %v323
        %v326 = vmul.f32 %v324, %v324
        %v327 = vmul.f32 %v325, %v325
        %328 = vadd.xlane.f32.xlu0 %v326
        %v329 = vpop.xlane.xlu0 %328
        %330 = vadd.xlane.f32.xlu0 %v327
        %v331 = vpop.xlane.xlu0 %330
        %v332 = vmul.f32 %v329, 0.03125
        %v333 = vmul.f32 %v331, 0.03125
        %v334 = vadd.f32 %v332, 1e-05
        %v335 = vadd.f32 %v333, 1e-05
        %v336 = vrsqrt.pop %v334
        %v337 = vmul.f32 %v336, %v334
        %v338 = vmul.f32 %v337, %v336
        %v339 = vmul.f32 0.5, %v338
        %v340 = vsub.f32 1.5, %v339
        %v341 = vmul.f32 %v336, %v340
        %vm342 = vweird.f32 %v334
        %vm343 = vweird.f32 %v336
        %vm344 = vmor %vm342, %vm343
        %v345 = vsel %vm344, %v336, %v341
        %v346 = vrsqrt.pop %v335
        %v347 = vmul.f32 %v346, %v335
        %v348 = vmul.f32 %v347, %v346
        %v349 = vmul.f32 0.5, %v348
        %v350 = vsub.f32 1.5, %v349
        %v351 = vmul.f32 %v346, %v350
        %vm352 = vweird.f32 %v335
        %vm353 = vweird.f32 %v346
        %vm354 = vmor %vm352, %vm353
        %v355 = vsel %vm354, %v346, %v351
        %v356 = vmul.f32 %v324, %v345
        %v357 = vmul.f32 %v325, %v355
        %v358 = vperm.slane %v225, 0
        %v359 = vmul.f32 %v356, %v358
        %v360 = vmul.f32 %v357, %v358
        %v361 = vperm.slane %v226, 0
        %v362 = vadd.f32 %v359, %v361
        %v363 = vadd.f32 %v360, %v361
        %v364 = vpack.c.bf16 %v362, %v362
        %v365 = vpack.c.bf16 %v363, %v363
        %366 = vst [vmem:[%s221] sm:$0xf] %v364
        %367 = vst [vmem:[%s221 + $0x4] sm:$0xf] %v365
        %s368 = sand.u32 %s97, 1
        %s369 = scalar_lea.sflag [#allocation4], %s368
        %s370 = sand.u32 %s97, 1
        %s371 = smul.addr %s370, 8
        %s372 = scalar_lea.vmem [#allocation8], %s371
        // Predicated region
        $region45: #{tpu_custom_call.1} parent=31 // pred_check
          %p373 = pneg %p107
        $region46: #{tpu_custom_call.1} parent=31 // pred_check_branch
          %375 = sbr.rel (%p373) target = $region48
        $region47: #{tpu_custom_call.1} parent=31 // pred_region
          %s376 = smul.u32 2, %s21
          %378 = vsyncadd %s369, 0
          %s379 = smul.addr %s376, 4
          %s380 = scalar_lea.hbm %s3, %s379
          %s381 = sshll.u32 %s372, 4
          %s382 = int_to_ptr.vmem [resolvable:$true] %s381
          %s383 = sshll.u32 %s380, 4
          %s384 = int_to_ptr.hbm [resolvable:$true] %s383
          %389 = dma.vmem_to_hbm [thread:$0]  %s382, 128, %s384, %s369, 64, 64, 4
        $region48: #{tpu_custom_call.1} parent=31 // pred_fallthru
          _
      $region32: #{tpu_custom_call.1} parent=5 // pred_fallthru
        _
      %p390 = scmp.le.s32.totalorder 2, %s16
      // Predicated region
      $region49: #{tpu_custom_call.1} parent=5 // pred_check
        %p391 = pneg %p390
      $region50: #{tpu_custom_call.1} parent=5 // pred_check_branch
        %393 = sbr.rel (%p391) target = $region52
      $region51: #{tpu_custom_call.1} parent=5 // pred_region
        %s394 = ssub.s32 %s16, 2
        // Predicated region
        $region53: #{tpu_custom_call.1} parent=51 // pred_check
          %p395 = pneg %p113
        $region54: #{tpu_custom_call.1} parent=51 // pred_check_branch
          %397 = sbr.rel (%p395) target = $region56
        $region55: #{tpu_custom_call.1} parent=51 // pred_region
          %s398 = sand.u32 %s98, 1
          %s399 = scalar_lea.sflag [#allocation4], %s398
          %s400 = sand.u32 %s98, 1
          %s401 = smul.addr %s400, 8
          %s402 = scalar_lea.vmem [#allocation8], %s401
          %404 = dma.done %s399, 128
        $region56: #{tpu_custom_call.1} parent=51 // pred_fallthru
          _
      $region52: #{tpu_custom_call.1} parent=5 // pred_fallthru
        _
    $region6: #{tpu_custom_call.1} parent=1 // loop_footer
      %s20 = sadd.s32 1, %s16
    $region7: #{tpu_custom_call.1} parent=1 // loop_footer_branch
      %15 = sbr.rel target = $region3
    $region8: #{tpu_custom_call.1} parent=1 // loop_exit
      _
    %405 = vsyncpa [#allocation3], 1
    %s406 = scalar_lea.sflag [#allocation3], 1
    %407 = vsyncpa %s406, 1
    %408 = vsyncpa [#allocation6], 1
    %409 = vsyncpa [#allocation4], 1
    %s410 = scalar_lea.sflag [#allocation4], 1
    %411 = vsyncpa %s410, 1

</llo_original>
